<compile_context>
chip_gen: v7x
topology: tpu7x:2x2x1
jax: 0.10.0
libtpu: 0.0.40
codegen_flags: <defaults>
</compile_context>

<pallas_src>
import math

import jax
import jax.numpy as jnp
from jax.experimental import pallas as pl
from jax.experimental.pallas import tpu as pltpu


# ----------------------------- Pallas kernel --------------------------------
def rainbow_kernel(x_ref, wphi_ref, bphi_ref, wq_ref, bq_ref, red_ref, q_ref):
    f32 = jnp.float32
    n_output = q_ref.shape[-1]
    a_pad = wq_ref.shape[-1] // n_output

    # features: ReLU(x @ W_phi + b_phi)   (f32 MXU accumulation, f32 VPU math)
    feat = jnp.dot(x_ref[...], wphi_ref[...], preferred_element_type=f32)
    feat = jnp.maximum(feat + bphi_ref[...], 0.0)                 # (tB, F)

    # fused dueling pre-softmax logits: ONE MXU matmul against the pre-folded
    # (F, n_output*A_pad) weight.  The bias (carrying the -1e9 padded-atom
    # offset) is added in f32 AFTER the matmul — never folded into a bf16 operand.
    logits = jnp.dot(feat.astype(wq_ref.dtype), wq_ref[...],
                     preferred_element_type=f32) + bq_ref[...]    # (tB, n_out*A_pad)

    # per-action (64-atom block) max subtraction, then one full-width exp (EUP)
    shifted = jnp.concatenate(
        [logits[:, i * a_pad:(i + 1) * a_pad]
         - jnp.max(logits[:, i * a_pad:(i + 1) * a_pad], axis=-1, keepdims=True)
         for i in range(n_output)], axis=-1)
    e = jnp.exp(shifted)                                          # f32

    # all av-weighted numerators + denominators in ONE matmul against the
    # block-diagonal reduction matrix (kept f32 for accurate sums).
    nd = jnp.dot(e, red_ref[...], preferred_element_type=f32)     # (tB, 2*n_out)
    num = nd[:, :n_output]
    den = nd[:, n_output:]
    # exact reciprocal: only n_output lanes per row, approx buys nothing here
    # and exact avoids argmax flips on near-tie Q-values.
    q_ref[...] = num * pl.reciprocal(den, approx=False)
    # TODO(synk): for very large batch tiles, emit q as (n_output, B) (lane-dense)
    # and transpose in the wrapper to avoid masked vst on the 4-wide last dim.


# --------------------- wrapper-side (XLA) parameter fold ---------------------
def _realize_and_fold(mu_s, sig_s, bmu_s, bsig_s, fin_s, fout_s, a_values, a_pad):
    """Realize NoisyLinear weights, fold the dueling combine, pad the atom axis.

    mu_s/sig_s: (K, F, A) weights stored (in, out)-transposed; stream 0 = value.
    fin_s: (F, K) = f(eps_in) per stream; fout_s: (K, A) = f(eps_out) per stream.
    Returns w_q (F, n_out*a_pad), b_q (1, n_out*a_pad), red (n_out*a_pad, 2*n_out).
    """
    K, F, A = mu_s.shape
    n_output = K - 1
    eps_w = fin_s.T[:, :, None] * fout_s[:, None, :]           # (K, F, A)
    w = mu_s + sig_s * eps_w                                   # realized weights
    b = bmu_s + bsig_s * fout_s                                # realized biases (K, A)
    # dueling fold: block i = value + adv_i - mean_j adv_j
    w_q = w[0][None] + w[1:] - jnp.mean(w[1:], axis=0, keepdims=True)   # (n_out, F, A)
    b_q = b[0][None] + b[1:] - jnp.mean(b[1:], axis=0, keepdims=True)   # (n_out, A)
    # pad atoms A -> a_pad: zero weight, -1e9 bias, zero support => zero mass
    pad = a_pad - A
    w_q = jnp.pad(w_q, ((0, 0), (0, 0), (0, pad)))
    b_q = jnp.pad(b_q, ((0, 0), (0, pad)), constant_values=-1e9)
    av_p = jnp.pad(a_values.reshape(-1), (0, pad))
    # fused layout: column block i of the (F, n_out*a_pad) weight = action i
    w_q = jnp.transpose(w_q, (1, 0, 2)).reshape(F, n_output * a_pad)
    b_q = b_q.reshape(1, n_output * a_pad)
    # block-diagonal reduction matrix: [av per 64-block | ones per 64-block]
    onehot = jax.nn.one_hot(jnp.repeat(jnp.arange(n_output), a_pad), n_output,
                            dtype=jnp.float32)                 # (n_out*a_pad, n_out)
    red = jnp.concatenate([onehot * jnp.tile(av_p, n_output)[:, None], onehot],
                          axis=-1)                              # (n_out*a_pad, 2*n_out)
    return w_q, b_q, red


# ------------------------------- wrapper -------------------------------------
def rainbow_forward(x, w_phi, b_phi, mu_s, sig_s, bmu_s, bsig_s, fin_s, fout_s,
                    a_values, *, batch_tile=2048, min_grid_steps=2,
                    mxu_dtype=jnp.float32):
    B, d_in = x.shape
    n_feat = w_phi.shape[1]
    n_output = mu_s.shape[0] - 1
    n_atoms = a_values.shape[-1]
    a_pad = ((n_atoms + 63) // 64) * 64        # lane/MXU friendly atom padding

    w_q, b_q, red = _realize_and_fold(mu_s, sig_s, bmu_s, bsig_s,
                                      fin_s, fout_s, a_values, a_pad)

    # bf16 MXU operands are valid on v5e/v6e/v7x (bf16-native MXU).  Pre-cast
    # once here so the kernel never re-casts resident weights per grid step;
    # biases and all elementwise/softmax math stay f32.
    x_k = x.astype(mxu_dtype)
    wphi_k = w_phi.astype(mxu_dtype)
    wq_k = w_q.astype(mxu_dtype)

    # Batch tiling: the kernel is per-grid-step-overhead bound (~0.35 us/step),
    # so use big tiles; VMEM is a non-issue (~2.5 MiB live at tb=2048 vs 64 MiB
    # physical on v7x, 128 MiB on v5e/v6e).  Keep >= min_grid_steps tiles when
    # the batch allows so both v7x TensorCores get work under "parallel";
    # on single-TC v5e/v6e pass min_grid_steps=1 for one big tile if desired.
    if B <= 8:
        tb = B
    else:
        want = min(batch_tile, max(8, pl.cdiv(B, max(1, min_grid_steps))))
        tb = min(B, ((want + 7) // 8) * 8)     # multiple of 8 sublanes, or full B
    grid = (pl.cdiv(B, tb),)

    def const(shape):                           # weights stay VMEM resident
        return pl.BlockSpec(shape, lambda b: (0,) * len(shape))

    itemsize = jnp.dtype(mxu_dtype).itemsize
    cost = pl.CostEstimate(
        flops=int(2 * B * (d_in * n_feat + n_feat * n_output * a_pad
                           + n_output * a_pad * 2 * n_output)),
        transcendentals=int(B * n_output * a_pad),
        bytes_accessed=int(itemsize * (x_k.size + wphi_k.size + wq_k.size)
                           + 4 * (b_phi.size + b_q.size + red.size
                                  + B * n_output)))

    return pl.pallas_call(
        rainbow_kernel,
        out_shape=jax.ShapeDtypeStruct((B, n_output), jnp.float32),
        grid=grid,
        in_specs=[
            pl.BlockSpec((tb, d_in), lambda b: (b, 0)),          # x (batch-tiled)
            const((d_in, n_feat)),                               # W_phi
            const((1, n_feat)),                                  # b_phi
            const((n_feat, n_output * a_pad)),                   # fused dueling weight
            const((1, n_output * a_pad)),                        # fused dueling bias
            const((n_output * a_pad, 2 * n_output)),             # softmax reduction matrix
        ],
        out_specs=pl.BlockSpec((tb, n_output), lambda b: (b, 0)),
        compiler_params=pltpu.CompilerParams(
            dimension_semantics=("parallel",),                   # v7x: 2 TCs split tiles
            vmem_limit_bytes=32 * 1024 * 1024),
        cost_estimate=cost,
    )(x_k, wphi_k, b_phi, wq_k, b_q, red)


# ------------------------------ pure-JAX ref ----------------------------------
def rainbow_ref(x, w_phi, b_phi, mu_s, sig_s, bmu_s, bsig_s, fin_s, fout_s,
                a_values):
    n_output = fout_s.shape[0] - 1
    eps_w = fin_s.T[:, :, None] * fout_s[:, None, :]       # outer(f(eps_in), f(eps_out))
    w = mu_s + sig_s * eps_w                               # realized (in, out) weights
    b = bmu_s + bsig_s * fout_s                            # realized biases
    feat = jnp.maximum(x @ w_phi + b_phi, 0.0)
    a_pv = feat @ w[0] + b[0]
    a_pa = jnp.stack([feat @ w[1 + i] + b[1 + i] for i in range(n_output)], axis=1)
    mean_a = a_pa.mean(axis=1, keepdims=True)
    sm = jax.nn.softmax(a_pv[:, None, :] + a_pa - mean_a, axis=-1)
    return jnp.einsum('boa,a->bo', sm, a_values.reshape(-1))


# ---------------------------------- main --------------------------------------
if __name__ == "__main__":
    B, D_in = 16, 16
    n_features = 32
    n_atoms = 51
    n_output = 4
    v_min, v_max = -10.0, 10.0
    sigma_coeff = 0.5
    K = n_output + 1                      # value stream + n_output advantage streams

    root = jax.random.PRNGKey(0)
    k_x, k_phi, k_noisy, k_eps = jax.random.split(root, 4)

    # input state (flattened features; generic features_network = Linear + ReLU)
    x = jax.random.normal(k_x, (B, D_in), dtype=jnp.float32)

    bound = 1.0 / math.sqrt(D_in)
    kw, kb = jax.random.split(k_phi)
    w_phi = jax.random.uniform(kw, (D_in, n_features), jnp.float32, -bound, bound)
    b_phi = jax.random.uniform(kb, (1, n_features), jnp.float32, -bound, bound)

    # NoisyLinear parameters, stored pre-transposed to (in, out); stream 0 = _pv
    bw = 1.0 / math.sqrt(n_features)
    bs = sigma_coeff / math.sqrt(n_features)
    mu_list, bmu_list = [], []
    for k in range(K):
        k1, k2 = jax.random.split(jax.random.fold_in(k_noisy, k))
        mu_list.append(jax.random.uniform(k1, (n_features, n_atoms), jnp.float32, -bw, bw))
        bmu_list.append(jax.random.uniform(k2, (n_atoms,), jnp.float32, -bw, bw))
    mu_s = jnp.stack(mu_list)                                   # (K, F, A)
    sig_s = jnp.full((K, n_features, n_atoms), bs, jnp.float32)
    bmu_s = jnp.stack(bmu_list)                                 # (K, A)
    bsig_s = jnp.full((K, n_atoms), bs, jnp.float32)

    # per-forward factorized noise (spec uses torch.rand -> uniform [0,1))
    def f_noise(e):
        return jnp.sign(e) * jnp.sqrt(jnp.abs(e))

    k_in, k_out = jax.random.split(k_eps)
    fin_s = f_noise(jax.random.uniform(k_in, (n_features, K), dtype=jnp.float32))
    fout_s = f_noise(jax.random.uniform(k_out, (K, n_atoms), dtype=jnp.float32))

    # support atoms: torch.arange(v_min, v_max + eps, delta) == linspace
    a_values = jnp.linspace(v_min, v_max, n_atoms, dtype=jnp.float32).reshape(1, n_atoms)

    # TODO(synk): action-gather (q.gather(1, action)) and get_distribution
    # branches are trivial indexing left to the caller; this kernel computes the
    # default forward path (action=None, get_distribution=False).

    args = (x, w_phi, b_phi, mu_s, sig_s, bmu_s, bsig_s, fin_s, fout_s, a_values)
    q_ref = rainbow_ref(*args)

    # f32 MXU path, >=2 grid steps (exercises batch tiling / megacore split)
    q = jax.block_until_ready(rainbow_forward(*args))
    assert q.shape == (B, n_output)
    assert bool(jnp.all(jnp.isfinite(q)))
    assert jnp.allclose(q, q_ref, atol=2e-3, rtol=1e-3), \
        float(jnp.max(jnp.abs(q - q_ref)))

    # f32 MXU path, single big tile (v5e/v6e-style grid=1)
    q1 = jax.block_until_ready(rainbow_forward(*args, min_grid_steps=1))
    assert jnp.allclose(q1, q_ref, atol=2e-3, rtol=1e-3), \
        float(jnp.max(jnp.abs(q1 - q_ref)))

    # bf16 MXU operands (valid on v5e/v6e/v7x; elementwise math stays f32).
    # Tolerance sized to bf16 operand rounding through two small matmuls.
    q_bf16 = jax.block_until_ready(rainbow_forward(*args, mxu_dtype=jnp.bfloat16))
    assert q_bf16.shape == (B, n_output)
    assert bool(jnp.all(jnp.isfinite(q_bf16)))
    assert jnp.allclose(q_bf16, q_ref, atol=0.25), \
        float(jnp.max(jnp.abs(q_bf16 - q_ref)))

    print("KERNEL_OK")
</pallas_src>

<mosaic_0001>
module attributes {stable_mosaic.version = 11 : i64} {
  func.func @rainbow_kernel(%arg0: i32, %arg1: memref<8x16xf32, #tpu.memory_space<vmem>>, %arg2: memref<16x32xf32, #tpu.memory_space<vmem>>, %arg3: memref<1x32xf32, #tpu.memory_space<vmem>>, %arg4: memref<32x256xf32, #tpu.memory_space<vmem>>, %arg5: memref<1x256xf32, #tpu.memory_space<vmem>>, %arg6: memref<256x8xf32, #tpu.memory_space<vmem>>, %arg7: memref<8x4xf32, #tpu.memory_space<vmem>>) attributes {dimension_semantics = [#tpu.dimension_semantics<parallel>], iteration_bounds = array<i64: 2>, scalar_prefetch = 0 : i64, scratch_operands = 0 : i64, tpu.core_type = #tpu.core_type<tc>, window_params = [{transform_indices = @transform_0, window_bounds = array<i64: 8, 16>}, {pipeline_mode = #tpu.pipeline_mode<synchronous>, transform_indices = @transform_1, window_bounds = array<i64: 16, 32>}, {pipeline_mode = #tpu.pipeline_mode<synchronous>, transform_indices = @transform_2, window_bounds = array<i64: 1, 32>}, {pipeline_mode = #tpu.pipeline_mode<synchronous>, transform_indices = @transform_3, window_bounds = array<i64: 32, 256>}, {pipeline_mode = #tpu.pipeline_mode<synchronous>, transform_indices = @transform_4, window_bounds = array<i64: 1, 256>}, {pipeline_mode = #tpu.pipeline_mode<synchronous>, transform_indices = @transform_5, window_bounds = array<i64: 256, 8>}, {transform_indices = @transform_6, window_bounds = array<i64: 8, 4>}]} {
    %c0 = arith.constant 0 : index
    %c0_0 = arith.constant 0 : index
    %0 = vector.load %arg1[%c0, %c0_0] : memref<8x16xf32, #tpu.memory_space<vmem>>, vector<8x16xf32>
    %c0_1 = arith.constant 0 : index
    %c0_2 = arith.constant 0 : index
    %1 = vector.load %arg2[%c0_1, %c0_2] : memref<16x32xf32, #tpu.memory_space<vmem>>, vector<16x32xf32>
    %cst = arith.constant dense<0.000000e+00> : vector<8x32xf32>
    %2 = tpu.matmul %0, %1, %cst {dimension_numbers = #tpu.dot_dimension_numbers<[1], [0], [0], [1], [0, 0, 1, 1], [], []>} : vector<8x16xf32>, vector<16x32xf32>, vector<8x32xf32> -> vector<8x32xf32>
    %c0_3 = arith.constant 0 : index
    %c0_4 = arith.constant 0 : index
    %3 = vector.load %arg3[%c0_3, %c0_4] : memref<1x32xf32, #tpu.memory_space<vmem>>, vector<1x32xf32>
    %4 = vector.broadcast %3 : vector<1x32xf32> to vector<8x32xf32>
    %5 = arith.addf %2, %4 : vector<8x32xf32>
    %cst_5 = arith.constant 0.000000e+00 : f32
    %6 = vector.broadcast %cst_5 : f32 to vector<8x32xf32>
    %7 = arith.maximumf %5, %6 : vector<8x32xf32>
    %c0_6 = arith.constant 0 : index
    %c0_7 = arith.constant 0 : index
    %8 = vector.load %arg4[%c0_6, %c0_7] : memref<32x256xf32, #tpu.memory_space<vmem>>, vector<32x256xf32>
    %cst_8 = arith.constant dense<0.000000e+00> : vector<8x256xf32>
    %9 = tpu.matmul %7, %8, %cst_8 {dimension_numbers = #tpu.dot_dimension_numbers<[1], [0], [0], [1], [0, 0, 1, 1], [], []>} : vector<8x32xf32>, vector<32x256xf32>, vector<8x256xf32> -> vector<8x256xf32>
    %c0_9 = arith.constant 0 : index
    %c0_10 = arith.constant 0 : index
    %10 = vector.load %arg5[%c0_9, %c0_10] : memref<1x256xf32, #tpu.memory_space<vmem>>, vector<1x256xf32>
    %11 = vector.broadcast %10 : vector<1x256xf32> to vector<8x256xf32>
    %12 = arith.addf %9, %11 : vector<8x256xf32>
    %13 = vector.extract_strided_slice %12 {offsets = [0, 0], sizes = [8, 64], strides = [1, 1]} : vector<8x256xf32> to vector<8x64xf32>
    %14 = vector.extract_strided_slice %12 {offsets = [0, 0], sizes = [8, 64], strides = [1, 1]} : vector<8x256xf32> to vector<8x64xf32>
    %cst_11 = arith.constant dense<0xFF800000> : vector<8xf32>
    %15 = vector.multi_reduction <maximumf>, %14, %cst_11 [1] : vector<8x64xf32> to vector<8xf32>
    %16 = vector.shape_cast %15 : vector<8xf32> to vector<8x1xf32>
    %17 = vector.broadcast %16 : vector<8x1xf32> to vector<8x64xf32>
    %18 = arith.subf %13, %17 : vector<8x64xf32>
    %19 = vector.extract_strided_slice %12 {offsets = [0, 64], sizes = [8, 64], strides = [1, 1]} : vector<8x256xf32> to vector<8x64xf32>
    %20 = vector.extract_strided_slice %12 {offsets = [0, 64], sizes = [8, 64], strides = [1, 1]} : vector<8x256xf32> to vector<8x64xf32>
    %cst_12 = arith.constant dense<0xFF800000> : vector<8xf32>
    %21 = vector.multi_reduction <maximumf>, %20, %cst_12 [1] : vector<8x64xf32> to vector<8xf32>
    %22 = vector.shape_cast %21 : vector<8xf32> to vector<8x1xf32>
    %23 = vector.broadcast %22 : vector<8x1xf32> to vector<8x64xf32>
    %24 = arith.subf %19, %23 : vector<8x64xf32>
    %25 = vector.extract_strided_slice %12 {offsets = [0, 128], sizes = [8, 64], strides = [1, 1]} : vector<8x256xf32> to vector<8x64xf32>
    %26 = vector.extract_strided_slice %12 {offsets = [0, 128], sizes = [8, 64], strides = [1, 1]} : vector<8x256xf32> to vector<8x64xf32>
    %cst_13 = arith.constant dense<0xFF800000> : vector<8xf32>
    %27 = vector.multi_reduction <maximumf>, %26, %cst_13 [1] : vector<8x64xf32> to vector<8xf32>
    %28 = vector.shape_cast %27 : vector<8xf32> to vector<8x1xf32>
    %29 = vector.broadcast %28 : vector<8x1xf32> to vector<8x64xf32>
    %30 = arith.subf %25, %29 : vector<8x64xf32>
    %31 = vector.extract_strided_slice %12 {offsets = [0, 192], sizes = [8, 64], strides = [1, 1]} : vector<8x256xf32> to vector<8x64xf32>
    %32 = vector.extract_strided_slice %12 {offsets = [0, 192], sizes = [8, 64], strides = [1, 1]} : vector<8x256xf32> to vector<8x64xf32>
    %cst_14 = arith.constant dense<0xFF800000> : vector<8xf32>
    %33 = vector.multi_reduction <maximumf>, %32, %cst_14 [1] : vector<8x64xf32> to vector<8xf32>
    %34 = vector.shape_cast %33 : vector<8xf32> to vector<8x1xf32>
    %35 = vector.broadcast %34 : vector<8x1xf32> to vector<8x64xf32>
    %36 = arith.subf %31, %35 : vector<8x64xf32>
    %37 = tpu.concatenate %18, %24, %30, %36 in 1 : vector<8x64xf32>, vector<8x64xf32>, vector<8x64xf32>, vector<8x64xf32> -> vector<8x256xf32>
    %38 = math.exp %37 : vector<8x256xf32>
    %c0_15 = arith.constant 0 : index
    %c0_16 = arith.constant 0 : index
    %39 = vector.load %arg6[%c0_15, %c0_16] : memref<256x8xf32, #tpu.memory_space<vmem>>, vector<256x8xf32>
    %cst_17 = arith.constant dense<0.000000e+00> : vector<8x8xf32>
    %40 = tpu.matmul %38, %39, %cst_17 {dimension_numbers = #tpu.dot_dimension_numbers<[1], [0], [0], [1], [0, 0, 1, 1], [], []>} : vector<8x256xf32>, vector<256x8xf32>, vector<8x8xf32> -> vector<8x8xf32>
    %41 = vector.extract_strided_slice %40 {offsets = [0, 0], sizes = [8, 4], strides = [1, 1]} : vector<8x8xf32> to vector<8x4xf32>
    %42 = vector.extract_strided_slice %40 {offsets = [0, 4], sizes = [8, 4], strides = [1, 1]} : vector<8x8xf32> to vector<8x4xf32>
    %43 = tpu.reciprocal %42 : vector<8x4xf32> -> vector<8x4xf32>
    %44 = arith.mulf %41, %43 : vector<8x4xf32>
    %c0_18 = arith.constant 0 : index
    %c0_19 = arith.constant 0 : index
    %45 = vector.load %arg7[%c0_18, %c0_19] : memref<8x4xf32, #tpu.memory_space<vmem>>, vector<8x4xf32>
    tpu.vector_store %arg7[%c0_18, %c0_19], %44 {strides = array<i32>} : memref<8x4xf32, #tpu.memory_space<vmem>>, vector<8x4xf32>,
    return
  }
  func.func @transform_0(%arg0: i32) -> (i32, i32) {
    %c0_i32 = arith.constant 0 : i32
    %c0_i32_0 = arith.constant 0 : i32
    return %arg0, %c0_i32 : i32, i32
  }
  func.func @transform_1(%arg0: i32) -> (i32, i32) {
    %c0_i32 = arith.constant 0 : i32
    %c0_i32_0 = arith.constant 0 : i32
    %c0_i32_1 = arith.constant 0 : i32
    return %c0_i32, %c0_i32_0 : i32, i32
  }
  func.func @transform_2(%arg0: i32) -> (i32, i32) {
    %c0_i32 = arith.constant 0 : i32
    %c0_i32_0 = arith.constant 0 : i32
    %c0_i32_1 = arith.constant 0 : i32
    return %c0_i32, %c0_i32_0 : i32, i32
  }
  func.func @transform_3(%arg0: i32) -> (i32, i32) {
    %c0_i32 = arith.constant 0 : i32
    %c0_i32_0 = arith.constant 0 : i32
    %c0_i32_1 = arith.constant 0 : i32
    return %c0_i32, %c0_i32_0 : i32, i32
  }
  func.func @transform_4(%arg0: i32) -> (i32, i32) {
    %c0_i32 = arith.constant 0 : i32
    %c0_i32_0 = arith.constant 0 : i32
    %c0_i32_1 = arith.constant 0 : i32
    return %c0_i32, %c0_i32_0 : i32, i32
  }
  func.func @transform_5(%arg0: i32) -> (i32, i32) {
    %c0_i32 = arith.constant 0 : i32
    %c0_i32_0 = arith.constant 0 : i32
    %c0_i32_1 = arith.constant 0 : i32
    return %c0_i32, %c0_i32_0 : i32, i32
  }
  func.func @transform_6(%arg0: i32) -> (i32, i32) {
    %c0_i32 = arith.constant 0 : i32
    %c0_i32_0 = arith.constant 0 : i32
    return %arg0, %c0_i32 : i32, i32
  }
}

</mosaic_0001>

<llo_original>
// kernel: tpu_custom_call.1
$region0: #{tpu_custom_call.1}
  #allocation0 [shape = 'u32[]', space=smem, size = 0x4, offset = 0x4, fixed_abs, tag = 'smem constant byte address 0x4 - core index']
  #allocation1 [shape = 'u32[144,128]{1,0:T(1,128)}', space=vmem, size = 0x12000, scoped, tag = 'internal scratch']
  %s0 = inlined_call_operand.vmem [shape: f32[16,16], index: 0, kind: input, shape index: {}]
  %s1 = inlined_call_operand.vmem [shape: f32[16,32], index: 1, kind: input, shape index: {}]
  %s2 = inlined_call_operand.vmem [shape: f32[1,32], index: 2, kind: input, shape index: {}]
  %s3 = inlined_call_operand.vmem [shape: f32[32,256], index: 3, kind: input, shape index: {}]
  %s4 = inlined_call_operand.vmem [shape: f32[1,256], index: 4, kind: input, shape index: {}]
  %s5 = inlined_call_operand.vmem [shape: f32[256,8], index: 5, kind: input, shape index: {}]
  %s6 = inlined_call_operand.vmem [shape: f32[16,4], index: 6, kind: output, shape index: {}]
  %s7 = sld [smem:[#allocation0]]
  $region57: #{tpu_custom_call.1} parent=0
    _
  %s9 = ssub.s32 1, %s7
  %s10 = scalar_select 0, %s9, %s7
  loop: start=0, step=1, limit=4
  $region2: #{tpu_custom_call.1} parent=0 // loop_pre_header
    _
  $region3: #{tpu_custom_call.1} parent=0 // loop_header
    %s12 = sphi 0, %s16
    %p13 = scmp.ge.s32.totalorder %s12, 4
    %s22 = sphi 0, %s24
    %s25 = sphi 0, %s22
    %s26 = sphi 0, %s25
    %s42 = sphi 0, %s26
    %s46 = sphi 0, %s46
    %s48 = sphi 0, %s46
    %s49 = sphi 0, %s48
    %s63 = sphi 0, %s49
    %s67 = sphi 0, %s67
    %s69 = sphi 0, %s67
    %s70 = sphi 0, %s69
    %s84 = sphi 0, %s70
    %s88 = sphi 0, %s88
    %s90 = sphi 0, %s88
    %s91 = sphi 0, %s90
    %s105 = sphi 0, %s91
    %s109 = sphi 0, %s109
    %s111 = sphi 0, %s109
    %s112 = sphi 0, %s111
    %s126 = sphi 0, %s112
    %s130 = sphi 0, %s130
    %s132 = sphi 0, %s130
    %s133 = sphi 0, %s132
    %s147 = sphi 0, %s133
    %s153 = sphi 0, %s155
    %s156 = sphi 0, %s153
    %s157 = sphi 0, %s156
    %s173 = sphi 0, %s157
  $region4: #{tpu_custom_call.1} parent=0 // loop_header_branch
    %15 = sbr.rel (%p13) target = $region8
  $region5: #{tpu_custom_call.1} parent=0 // loop_body
    %s17 = ssub.s32 %s12, 1
    %s18 = ssub.s32 %s12, 2
    %s19 = sadd.s32 %s12, 1
    %s20 = ssub.s32 %s12, %s19
    %p21 = scmp.eq.s32.totalorder %s20, 0
    %s23 = sadd.s32 %s22, 1
    %s24 = scalar_select %p21, %s22, %s23
    %p27 = pneg %p21
    %p28 = scmp.eq.s32.totalorder %s12, 1
    %p29 = por %p27, %p28
    %p30 = scmp.ne.s32.totalorder %s22, %s25
    %p31 = scmp.eq.s32.totalorder %s12, 0
    %p32 = por %p30, %p31
    %p33 = scmp.ne.s32.totalorder %s22, %s25
    %p34 = scmp.eq.s32.totalorder %s17, 1
    %p35 = por %p33, %p34
    %p36 = scmp.ne.s32.totalorder %s25, %s26
    %p37 = scmp.eq.s32.totalorder %s17, 0
    %p38 = por %p36, %p37
    %p39 = scmp.ne.s32.totalorder %s25, %s26
    %p40 = scmp.eq.s32.totalorder %s18, 1
    %p41 = por %p39, %p40
    %p43 = scmp.ne.s32.totalorder %s26, %s42
    %p44 = scmp.eq.s32.totalorder %s18, 0
    %p45 = por %p43, %p44
    %s47 = sadd.s32 %s46, 1
    %p50 = scmp.eq.s32.totalorder %s12, 1
    %p51 = scmp.ne.s32.totalorder %s46, %s48
    %p52 = scmp.eq.s32.totalorder %s12, 0
    %p53 = por %p51, %p52
    %p54 = scmp.ne.s32.totalorder %s46, %s48
    %p55 = scmp.eq.s32.totalorder %s17, 1
    %p56 = por %p54, %p55
    %p57 = scmp.ne.s32.totalorder %s48, %s49
    %p58 = scmp.eq.s32.totalorder %s17, 0
    %p59 = por %p57, %p58
    %p60 = scmp.ne.s32.totalorder %s48, %s49
    %p61 = scmp.eq.s32.totalorder %s18, 1
    %p62 = por %p60, %p61
    %p64 = scmp.ne.s32.totalorder %s49, %s63
    %p65 = scmp.eq.s32.totalorder %s18, 0
    %p66 = por %p64, %p65
    %s68 = sadd.s32 %s67, 1
    %p71 = scmp.eq.s32.totalorder %s12, 1
    %p72 = scmp.ne.s32.totalorder %s67, %s69
    %p73 = scmp.eq.s32.totalorder %s12, 0
    %p74 = por %p72, %p73
    %p75 = scmp.ne.s32.totalorder %s67, %s69
    %p76 = scmp.eq.s32.totalorder %s17, 1
    %p77 = por %p75, %p76
    %p78 = scmp.ne.s32.totalorder %s69, %s70
    %p79 = scmp.eq.s32.totalorder %s17, 0
    %p80 = por %p78, %p79
    %p81 = scmp.ne.s32.totalorder %s69, %s70
    %p82 = scmp.eq.s32.totalorder %s18, 1
    %p83 = por %p81, %p82
    %p85 = scmp.ne.s32.totalorder %s70, %s84
    %p86 = scmp.eq.s32.totalorder %s18, 0
    %p87 = por %p85, %p86
    %s89 = sadd.s32 %s88, 1
    %p92 = scmp.eq.s32.totalorder %s12, 1
    %p93 = scmp.ne.s32.totalorder %s88, %s90
    %p94 = scmp.eq.s32.totalorder %s12, 0
    %p95 = por %p93, %p94
    %p96 = scmp.ne.s32.totalorder %s88, %s90
    %p97 = scmp.eq.s32.totalorder %s17, 1
    %p98 = por %p96, %p97
    %p99 = scmp.ne.s32.totalorder %s90, %s91
    %p100 = scmp.eq.s32.totalorder %s17, 0
    %p101 = por %p99, %p100
    %p102 = scmp.ne.s32.totalorder %s90, %s91
    %p103 = scmp.eq.s32.totalorder %s18, 1
    %p104 = por %p102, %p103
    %p106 = scmp.ne.s32.totalorder %s91, %s105
    %p107 = scmp.eq.s32.totalorder %s18, 0
    %p108 = por %p106, %p107
    %s110 = sadd.s32 %s109, 1
    %p113 = scmp.eq.s32.totalorder %s12, 1
    %p114 = scmp.ne.s32.totalorder %s109, %s111
    %p115 = scmp.eq.s32.totalorder %s12, 0
    %p116 = por %p114, %p115
    %p117 = scmp.ne.s32.totalorder %s109, %s111
    %p118 = scmp.eq.s32.totalorder %s17, 1
    %p119 = por %p117, %p118
    %p120 = scmp.ne.s32.totalorder %s111, %s112
    %p121 = scmp.eq.s32.totalorder %s17, 0
    %p122 = por %p120, %p121
    %p123 = scmp.ne.s32.totalorder %s111, %s112
    %p124 = scmp.eq.s32.totalorder %s18, 1
    %p125 = por %p123, %p124
    %p127 = scmp.ne.s32.totalorder %s112, %s126
    %p128 = scmp.eq.s32.totalorder %s18, 0
    %p129 = por %p127, %p128
    %s131 = sadd.s32 %s130, 1
    %p134 = scmp.eq.s32.totalorder %s12, 1
    %p135 = scmp.ne.s32.totalorder %s130, %s132
    %p136 = scmp.eq.s32.totalorder %s12, 0
    %p137 = por %p135, %p136
    %p138 = scmp.ne.s32.totalorder %s130, %s132
    %p139 = scmp.eq.s32.totalorder %s17, 1
    %p140 = por %p138, %p139
    %p141 = scmp.ne.s32.totalorder %s132, %s133
    %p142 = scmp.eq.s32.totalorder %s17, 0
    %p143 = por %p141, %p142
    %p144 = scmp.ne.s32.totalorder %s132, %s133
    %p145 = scmp.eq.s32.totalorder %s18, 1
    %p146 = por %p144, %p145
    %p148 = scmp.ne.s32.totalorder %s133, %s147
    %p149 = scmp.eq.s32.totalorder %s18, 0
    %p150 = por %p148, %p149
    %s151 = ssub.s32 %s12, %s19
    %p152 = scmp.eq.s32.totalorder %s151, 0
    %s154 = sadd.s32 %s153, 1
    %s155 = scalar_select %p152, %s153, %s154
    %p158 = pneg %p152
    %p159 = scmp.eq.s32.totalorder %s12, 1
    %p160 = por %p158, %p159
    %p161 = scmp.ne.s32.totalorder %s153, %s156
    %p162 = scmp.eq.s32.totalorder %s12, 0
    %p163 = por %p161, %p162
    %p164 = scmp.ne.s32.totalorder %s153, %s156
    %p165 = scmp.eq.s32.totalorder %s17, 1
    %p166 = por %p164, %p165
    %p167 = scmp.ne.s32.totalorder %s156, %s157
    %p168 = scmp.eq.s32.totalorder %s17, 0
    %p169 = por %p167, %p168
    %p170 = scmp.ne.s32.totalorder %s156, %s157
    %p171 = scmp.eq.s32.totalorder %s18, 1
    %p172 = por %p170, %p171
    %p174 = scmp.ne.s32.totalorder %s157, %s173
    %p175 = scmp.eq.s32.totalorder %s18, 0
    %p176 = por %p174, %p175
    %p177 = scmp.le.s32.totalorder 1, %s12
    %p178 = scmp.lt.s32.totalorder %s12, 3
    %p179 = pnand %p177, %p178
    %p180 = pneg %p179
    // Predicated region
    $region9: #{tpu_custom_call.1} parent=5 // pred_check
      _
    $region10: #{tpu_custom_call.1} parent=5 // pred_check_branch
      %182 = sbr.rel (%p179) target = $region12
    $region11: #{tpu_custom_call.1} parent=5 // pred_region
      %s183 = ssub.s32 %s12, 1
      // Predicated region
      $region13: #{tpu_custom_call.1} parent=11 // pred_check
        %p184 = pneg %p59
      $region14: #{tpu_custom_call.1} parent=11 // pred_check_branch
        %186 = sbr.rel (%p184) target = $region16
      $region15: #{tpu_custom_call.1} parent=11 // pred_region
        _
      $region16: #{tpu_custom_call.1} parent=11 // pred_fallthru
        _
      // Predicated region
      $region17: #{tpu_custom_call.1} parent=11 // pred_check
        %p187 = pneg %p80
      $region18: #{tpu_custom_call.1} parent=11 // pred_check_branch
        %189 = sbr.rel (%p187) target = $region20
      $region19: #{tpu_custom_call.1} parent=11 // pred_region
        _
      $region20: #{tpu_custom_call.1} parent=11 // pred_fallthru
        _
      // Predicated region
      $region21: #{tpu_custom_call.1} parent=11 // pred_check
        %p190 = pneg %p101
      $region22: #{tpu_custom_call.1} parent=11 // pred_check_branch
        %192 = sbr.rel (%p190) target = $region24
      $region23: #{tpu_custom_call.1} parent=11 // pred_region
        _
      $region24: #{tpu_custom_call.1} parent=11 // pred_fallthru
        _
      // Predicated region
      $region25: #{tpu_custom_call.1} parent=11 // pred_check
        %p193 = pneg %p122
      $region26: #{tpu_custom_call.1} parent=11 // pred_check_branch
        %195 = sbr.rel (%p193) target = $region28
      $region27: #{tpu_custom_call.1} parent=11 // pred_region
        _
      $region28: #{tpu_custom_call.1} parent=11 // pred_fallthru
        _
      // Predicated region
      $region29: #{tpu_custom_call.1} parent=11 // pred_check
        %p196 = pneg %p143
      $region30: #{tpu_custom_call.1} parent=11 // pred_check_branch
        %198 = sbr.rel (%p196) target = $region32
      $region31: #{tpu_custom_call.1} parent=11 // pred_region
        _
      $region32: #{tpu_custom_call.1} parent=11 // pred_fallthru
        _
    $region12: #{tpu_custom_call.1} parent=5 // pred_fallthru
      _
    %p199 = scmp.lt.s32.totalorder %s12, 2
    // Predicated region
    $region33: #{tpu_custom_call.1} parent=5 // pred_check
      %p200 = pneg %p199
    $region34: #{tpu_custom_call.1} parent=5 // pred_check_branch
      %202 = sbr.rel (%p200) target = $region36
    $region35: #{tpu_custom_call.1} parent=5 // pred_region
      // Predicated region
      $region37: #{tpu_custom_call.1} parent=35 // pred_check
        %p203 = pneg %p32
      $region38: #{tpu_custom_call.1} parent=35 // pred_check_branch
        %205 = sbr.rel (%p203) target = $region40
      $region39: #{tpu_custom_call.1} parent=35 // pred_region
        %p206 = scmp.lt.s32.totalorder %s12, 1
        %s207 = scalar_select %p206, %s12, 1
        %s208 = smul.addr %s207, 8
        %s209 = scalar_lea.vmem %s0, %s208
      $region40: #{tpu_custom_call.1} parent=35 // pred_fallthru
        _
    $region36: #{tpu_custom_call.1} parent=5 // pred_fallthru
      _
    %p210 = scmp.le.s32.totalorder 1, %s12
    %p211 = scmp.lt.s32.totalorder %s12, 3
    %p212 = pnand %p210, %p211
    %p213 = pneg %p212
    // Predicated region
    $region41: #{tpu_custom_call.1} parent=5 // pred_check
      _
    $region42: #{tpu_custom_call.1} parent=5 // pred_check_branch
      %215 = sbr.rel (%p212) target = $region44
    $region43: #{tpu_custom_call.1} parent=5 // pred_region
      %s216 = ssub.s32 %s12, 1
      %p217 = scmp.lt.s32.totalorder %s17, 1
      %s218 = scalar_select %p217, %s17, 1
      %s219 = smul.addr %s218, 8
      %s220 = scalar_lea.vmem %s0, %s219
      %p221 = pneg %p38
      %p222 = pneg %p35
      %p223 = pneg %p59
      %p224 = pneg %p56
      %p225 = pneg %p80
      %p226 = pneg %p77
      %p227 = pneg %p101
      %p228 = pneg %p98
      %p229 = pneg %p122
      %p230 = pneg %p119
      %p231 = pneg %p143
      %p232 = pneg %p140
      %p233 = pneg %p169
      %p234 = pneg %p166
      %p235 = scmp.lt.s32.totalorder %s17, 1
      %s236 = scalar_select %p235, %s17, 1
      %s237 = smul.addr %s236, 8
      %s238 = scalar_lea.vmem %s6, %s237
      %p239 = scmp.lt.s32.totalorder %s17, 1
      %s240 = scalar_select %p239, %s17, 1
      %s241 = smul.addr %s240, 8
      %s242 = scalar_lea.vmem %s0, %s241
      %p243 = scmp.lt.s32.totalorder %s17, 1
      %s244 = scalar_select %p243, %s17, 1
      %s245 = smul.addr %s244, 8
      %s246 = scalar_lea.vmem %s6, %s245
      %v247 = vld [vmem:[%s242] sm:$0xff]
      %v248 = vld [vmem:[%s1] sm:$0xff]
      %v249 = vld [vmem:[%s1 + $0x8] sm:$0xff]
      %v250 = vld [vmem:[%s2] sm:$0x1]
      %v252 = vlaneseq
      %v253 = vshrl.u32 %v252, 7
      %v254 = vsub.s32 0, %v253
      %v255 = vrot.slane %v250, %v254
      %vm257 = vcmask 130048
      %v259 = vsel %vm257, %v247, 0
      %261 = vmatprep.subr.mxu0 0.0
      %262 = vmatpush1.msra.mxu0 %v248
      %263 = vmatprep.subr.mxu0 0.0
      %264 = vmatpush1.msra.mxu0 %v249
      %265 = vmatprep.subr.mxu0 0.0
      %266 = vmatpush1.msra.mxu0 0.0
      %267 = vmatprep.subr.mxu0 0.0
      %268 = vmatpush1.msra.mxu0 0.0
      %269 = vmatprep.subr.mxu0 0.0
      %270 = vmatpush1.msra.mxu0 0.0
      %271 = vmatprep.subr.mxu0 0.0
      %272 = vmatpush1.msra.mxu0 0.0
      %273 = vmatprep.subr.mxu0 0.0
      %274 = vmatpush1.msra.mxu0 0.0
      %275 = vmatprep.subr.mxu0 0.0
      %276 = vmatpush1.msra.mxu0 0.0
      %277 = vmatprep.subr.mxu0 0.0
      %278 = vmatpush1.msra.mxu0 0.0
      %279 = vmatprep.subr.mxu0 0.0
      %280 = vmatpush1.msra.mxu0 0.0
      %281 = vmatprep.subr.mxu0 0.0
      %282 = vmatpush1.msra.mxu0 0.0
      %283 = vmatprep.subr.mxu0 0.0
      %284 = vmatpush1.msra.mxu0 0.0
      %285 = vmatprep.subr.mxu0 0.0
      %286 = vmatpush1.msra.mxu0 0.0
      %287 = vmatprep.subr.mxu0 0.0
      %288 = vmatpush1.msra.mxu0 0.0
      %289 = vmatprep.subr.mxu0 0.0
      %290 = vmatpush1.msra.mxu0 0.0
      %291 = vmatprep.subr.mxu0 0.0
      %292 = vmatpush1.msra.mxu0 0.0
      %293 = vmatprep.subr.mxu0 0.0
      %294 = vmatpush1.msra.mxu0 0.0
      %295 = vmatprep.subr.mxu0 0.0
      %296 = vmatpush1.msra.mxu0 0.0
      %297 = vmatprep.subr.mxu0 0.0
      %298 = vmatpush1.msra.mxu0 0.0
      %299 = vmatprep.subr.mxu0 0.0
      %300 = vmatpush1.msra.mxu0 0.0
      %301 = vmatprep.subr.mxu0 0.0
      %302 = vmatpush1.msra.mxu0 0.0
      %303 = vmatprep.subr.mxu0 0.0
      %304 = vmatpush1.msra.mxu0 0.0
      %305 = vmatprep.subr.mxu0 0.0
      %306 = vmatpush1.msra.mxu0 0.0
      %307 = vmatprep.subr.mxu0 0.0
      %308 = vmatpush1.msra.mxu0 0.0
      %309 = vmatprep.subr.mxu0 0.0
      %310 = vmatpush1.msra.mxu0 0.0
      %311 = vmatprep.subr.mxu0 0.0
      %312 = vmatpush1.msra.mxu0 0.0
      %313 = vmatprep.subr.mxu0 0.0
      %314 = vmatpush1.msra.mxu0 0.0
      %315 = vmatprep.subr.mxu0 0.0
      %316 = vmatpush1.msra.mxu0 0.0
      %317 = vmatprep.subr.mxu0 0.0
      %318 = vmatpush1.msra.mxu0 0.0
      %319 = vmatprep.subr.mxu0 0.0
      %320 = vmatpush1.msra.mxu0 0.0
      %321 = vmatprep.subr.mxu0 0.0
      %322 = vmatpush1.msra.mxu0 0.0
      %323 = vmatprep.subr.mxu0 0.0
      %324 = vmatpush1.msra.mxu0 0.0
      %325 = vmatprep.mubr.f32.mxu0 0.0
      %326 = vmatmul.mubr.f32.gmra.mrb[0].mxu0 %v259
      %v327 = vpop.f32.mrb[0].mxu0
      %v328 = vadd.f32 %v255, %v327
      %v329 = vpop.f32.mrb[0].mxu0
      %330 = vdwg.mxu0
      %v331 = vmax.f32 %v328, 0.0
      %v332 = vld [vmem:[%s3] sm:$0xff]
      %v333 = vld [vmem:[%s3 + $0x8] sm:$0xff]
      %v334 = vld [vmem:[%s3 + $0x10] sm:$0xff]
      %v335 = vld [vmem:[%s3 + $0x18] sm:$0xff]
      %v336 = vld [vmem:[%s3 + $0x20] sm:$0xff]
      %v337 = vld [vmem:[%s3 + $0x28] sm:$0xff]
      %v338 = vld [vmem:[%s3 + $0x30] sm:$0xff]
      %v339 = vld [vmem:[%s3 + $0x38] sm:$0xff]
      %v340 = vld [vmem:[%s4] sm:$0x3]
      %v342 = vlaneseq
      %v343 = vshrl.u32 %v342, 7
      %v344 = vsub.s32 0, %v343
      %v345 = vrot.slane %v340, %v344
      %v346 = vlaneseq
      %v347 = vshrl.u32 %v346, 7
      %v348 = vsub.s32 1, %v347
      %v349 = vrot.slane %v340, %v348
      %vm352 = vcmask 261120
      %v354 = vsel %vm352, %v331, 0
      %356 = vmatprep.subr.mxu0 %v333
      %357 = vmatpush1.msra.mxu0 %v332
      %358 = vmatprep.subr.mxu0 %v335
      %359 = vmatpush1.msra.mxu0 %v334
      %360 = vmatprep.subr.mxu0 %v337
      %361 = vmatpush1.msra.mxu0 %v336
      %362 = vmatprep.subr.mxu0 %v339
      %363 = vmatpush1.msra.mxu0 %v338
      %364 = vmatprep.subr.mxu0 0.0
      %365 = vmatpush1.msra.mxu0 0.0
      %366 = vmatprep.subr.mxu0 0.0
      %367 = vmatpush1.msra.mxu0 0.0
      %368 = vmatprep.subr.mxu0 0.0
      %369 = vmatpush1.msra.mxu0 0.0
      %370 = vmatprep.subr.mxu0 0.0
      %371 = vmatpush1.msra.mxu0 0.0
      %372 = vmatprep.subr.mxu0 0.0
      %373 = vmatpush1.msra.mxu0 0.0
      %374 = vmatprep.subr.mxu0 0.0
      %375 = vmatpush1.msra.mxu0 0.0
      %376 = vmatprep.subr.mxu0 0.0
      %377 = vmatpush1.msra.mxu0 0.0
      %378 = vmatprep.subr.mxu0 0.0
      %379 = vmatpush1.msra.mxu0 0.0
      %380 = vmatprep.subr.mxu0 0.0
      %381 = vmatpush1.msra.mxu0 0.0
      %382 = vmatprep.subr.mxu0 0.0
      %383 = vmatpush1.msra.mxu0 0.0
      %384 = vmatprep.subr.mxu0 0.0
      %385 = vmatpush1.msra.mxu0 0.0
      %386 = vmatprep.subr.mxu0 0.0
      %387 = vmatpush1.msra.mxu0 0.0
      %388 = vmatprep.subr.mxu0 0.0
      %389 = vmatpush1.msra.mxu0 0.0
      %390 = vmatprep.subr.mxu0 0.0
      %391 = vmatpush1.msra.mxu0 0.0
      %392 = vmatprep.subr.mxu0 0.0
      %393 = vmatpush1.msra.mxu0 0.0
      %394 = vmatprep.subr.mxu0 0.0
      %395 = vmatpush1.msra.mxu0 0.0
      %396 = vmatprep.subr.mxu0 0.0
      %397 = vmatpush1.msra.mxu0 0.0
      %398 = vmatprep.subr.mxu0 0.0
      %399 = vmatpush1.msra.mxu0 0.0
      %400 = vmatprep.subr.mxu0 0.0
      %401 = vmatpush1.msra.mxu0 0.0
      %402 = vmatprep.subr.mxu0 0.0
      %403 = vmatpush1.msra.mxu0 0.0
      %404 = vmatprep.subr.mxu0 0.0
      %405 = vmatpush1.msra.mxu0 0.0
      %406 = vmatprep.subr.mxu0 0.0
      %407 = vmatpush1.msra.mxu0 0.0
      %408 = vmatprep.subr.mxu0 0.0
      %409 = vmatpush1.msra.mxu0 0.0
      %410 = vmatprep.subr.mxu0 0.0
      %411 = vmatpush1.msra.mxu0 0.0
      %412 = vmatprep.subr.mxu0 0.0
      %413 = vmatpush1.msra.mxu0 0.0
      %414 = vmatprep.subr.mxu0 0.0
      %415 = vmatpush1.msra.mxu0 0.0
      %416 = vmatprep.subr.mxu0 0.0
      %417 = vmatpush1.msra.mxu0 0.0
      %418 = vmatprep.subr.mxu0 0.0
      %419 = vmatpush1.msra.mxu0 0.0
      %420 = vmatprep.mubr.f32.mxu0 0.0
      %421 = vmatmul.mubr.f32.gmra.mrb[0].mxu0 %v354
      %v422 = vpop.f32.mrb[0].mxu0
      %v423 = vadd.f32 %v345, %v422
      %v424 = vpop.f32.mrb[0].mxu0
      %v425 = vadd.f32 %v349, %v424
      %426 = vdwg.mxu0
      %vm427 = vcmask 523264
      %v428 = vsel %vm427, %v423, -inf
      %429 = vmax.xlane.f32.xlu0 %v428
      %v430 = vpop.xlane.xlu0 %429
      %v431 = vsub.f32 %v423, %v430
      %vm432 = vcmask 1048064
      %v433 = vsel %vm432, %v423, -inf
      %434 = vmax.xlane.f32.xlu0 %v433
      %v435 = vpop.xlane.xlu0 %434
      %v436 = vsub.f32 %v423, %v435
      %v437 = vsel %vm427, %v425, -inf
      %438 = vmax.xlane.f32.xlu0 %v437
      %v439 = vpop.xlane.xlu0 %438
      %v440 = vsub.f32 %v425, %v439
      %v441 = vsel %vm432, %v425, -inf
      %442 = vmax.xlane.f32.xlu0 %v441
      %v443 = vpop.xlane.xlu0 %442
      %v444 = vsub.f32 %v425, %v443
      %v445 = vsel %vm427, %v431, %v436
      %v446 = vsel %vm427, %v440, %v444
      %v447 = vmul.f32 %v445, 1.442695
      %v448 = vpow.pop %v447
      %v449 = vmul.f32 %v446, 1.442695
      %v450 = vpow.pop %v449
      %v451 = vld [vmem:[%s5] sm:$0xff]
      %v452 = vld [vmem:[%s5 + $0x8] sm:$0xff]
      %v453 = vld [vmem:[%s5 + $0x10] sm:$0xff]
      %v454 = vld [vmem:[%s5 + $0x18] sm:$0xff]
      %v455 = vld [vmem:[%s5 + $0x20] sm:$0xff]
      %v456 = vld [vmem:[%s5 + $0x28] sm:$0xff]
      %v457 = vld [vmem:[%s5 + $0x30] sm:$0xff]
      %v458 = vld [vmem:[%s5 + $0x38] sm:$0xff]
      %v459 = vld [vmem:[%s5 + $0x40] sm:$0xff]
      %v460 = vld [vmem:[%s5 + $0x48] sm:$0xff]
      %v461 = vld [vmem:[%s5 + $0x50] sm:$0xff]
      %v462 = vld [vmem:[%s5 + $0x58] sm:$0xff]
      %v463 = vld [vmem:[%s5 + $0x60] sm:$0xff]
      %v464 = vld [vmem:[%s5 + $0x68] sm:$0xff]
      %v465 = vld [vmem:[%s5 + $0x70] sm:$0xff]
      %v466 = vld [vmem:[%s5 + $0x78] sm:$0xff]
      %v467 = vld [vmem:[%s5 + $0x80] sm:$0xff]
      %v468 = vld [vmem:[%s5 + $0x88] sm:$0xff]
      %v469 = vld [vmem:[%s5 + $0x90] sm:$0xff]
      %v470 = vld [vmem:[%s5 + $0x98] sm:$0xff]
      %v471 = vld [vmem:[%s5 + $0xa0] sm:$0xff]
      %v472 = vld [vmem:[%s5 + $0xa8] sm:$0xff]
      %v473 = vld [vmem:[%s5 + $0xb0] sm:$0xff]
      %v474 = vld [vmem:[%s5 + $0xb8] sm:$0xff]
      %v475 = vld [vmem:[%s5 + $0xc0] sm:$0xff]
      %v476 = vld [vmem:[%s5 + $0xc8] sm:$0xff]
      %v477 = vld [vmem:[%s5 + $0xd0] sm:$0xff]
      %v478 = vld [vmem:[%s5 + $0xd8] sm:$0xff]
      %v479 = vld [vmem:[%s5 + $0xe0] sm:$0xff]
      %v480 = vld [vmem:[%s5 + $0xe8] sm:$0xff]
      %v481 = vld [vmem:[%s5 + $0xf0] sm:$0xff]
      %v482 = vld [vmem:[%s5 + $0xf8] sm:$0xff]
      %483 = vmatprep.subr.mxu0 0.0
      %484 = vmatpush1.msra.mxu0 %v451
      %485 = vmatprep.subr.mxu0 0.0
      %486 = vmatpush1.msra.mxu0 %v452
      %487 = vmatprep.subr.mxu0 0.0
      %488 = vmatpush1.msra.mxu0 %v453
      %489 = vmatprep.subr.mxu0 0.0
      %490 = vmatpush1.msra.mxu0 %v454
      %491 = vmatprep.subr.mxu0 0.0
      %492 = vmatpush1.msra.mxu0 %v455
      %493 = vmatprep.subr.mxu0 0.0
      %494 = vmatpush1.msra.mxu0 %v456
      %495 = vmatprep.subr.mxu0 0.0
      %496 = vmatpush1.msra.mxu0 %v457
      %497 = vmatprep.subr.mxu0 0.0
      %498 = vmatpush1.msra.mxu0 %v458
      %499 = vmatprep.subr.mxu0 0.0
      %500 = vmatpush1.msra.mxu0 %v459
      %501 = vmatprep.subr.mxu0 0.0
      %502 = vmatpush1.msra.mxu0 %v460
      %503 = vmatprep.subr.mxu0 0.0
      %504 = vmatpush1.msra.mxu0 %v461
      %505 = vmatprep.subr.mxu0 0.0
      %506 = vmatpush1.msra.mxu0 %v462
      %507 = vmatprep.subr.mxu0 0.0
      %508 = vmatpush1.msra.mxu0 %v463
      %509 = vmatprep.subr.mxu0 0.0
      %510 = vmatpush1.msra.mxu0 %v464
      %511 = vmatprep.subr.mxu0 0.0
      %512 = vmatpush1.msra.mxu0 %v465
      %513 = vmatprep.subr.mxu0 0.0
      %514 = vmatpush1.msra.mxu0 %v466
      %515 = vmatprep.subr.mxu0 0.0
      %516 = vmatpush1.msra.mxu0 %v467
      %517 = vmatprep.subr.mxu0 0.0
      %518 = vmatpush1.msra.mxu0 %v468
      %519 = vmatprep.subr.mxu0 0.0
      %520 = vmatpush1.msra.mxu0 %v469
      %521 = vmatprep.subr.mxu0 0.0
      %522 = vmatpush1.msra.mxu0 %v470
      %523 = vmatprep.subr.mxu0 0.0
      %524 = vmatpush1.msra.mxu0 %v471
      %525 = vmatprep.subr.mxu0 0.0
      %526 = vmatpush1.msra.mxu0 %v472
      %527 = vmatprep.subr.mxu0 0.0
      %528 = vmatpush1.msra.mxu0 %v473
      %529 = vmatprep.subr.mxu0 0.0
      %530 = vmatpush1.msra.mxu0 %v474
      %531 = vmatprep.subr.mxu0 0.0
      %532 = vmatpush1.msra.mxu0 %v475
      %533 = vmatprep.subr.mxu0 0.0
      %534 = vmatpush1.msra.mxu0 %v476
      %535 = vmatprep.subr.mxu0 0.0
      %536 = vmatpush1.msra.mxu0 %v477
      %537 = vmatprep.subr.mxu0 0.0
      %538 = vmatpush1.msra.mxu0 %v478
      %539 = vmatprep.subr.mxu0 0.0
      %540 = vmatpush1.msra.mxu0 %v479
      %541 = vmatprep.subr.mxu0 0.0
      %542 = vmatpush1.msra.mxu0 %v480
      %543 = vmatprep.subr.mxu0 0.0
      %544 = vmatpush1.msra.mxu0 %v481
      %545 = vmatprep.subr.mxu0 0.0
      %546 = vmatpush1.msra.mxu0 %v482
      %547 = vmatprep.mubr.f32.mxu0 %v450
      %548 = vmatmul.mubr.f32.gmra.mrb[0].mxu0 %v448
      %v549 = vpop.f32.mrb[0].mxu0
      %v550 = vadd.f32 0.0, %v549
      %v551 = vpop.f32.mrb[0].mxu0
      %552 = vdwg.mxu0
      %v553 = vrcp.pop %v550
      %555 = vrot.lane.b32.xlu0 %v553, 124
      %v556 = vpop.permute.xlu0 %555
      %v558 = vmul.f32 %v550, %v556
      %vm559 = vcmask 31744
      %560 = vst.msk [vmem:[%s246] sm:$0xff] %vm559, %v558
      %p561 = scmp.lt.s32.totalorder %s17, 1
      %s562 = scalar_select %p561, %s17, 1
      %s563 = smul.addr %s562, 8
      %s564 = scalar_lea.vmem %s6, %s563
      // Predicated region
      $region45: #{tpu_custom_call.1} parent=43 // pred_check
        %p565 = pneg %p166
      $region46: #{tpu_custom_call.1} parent=43 // pred_check_branch
        %567 = sbr.rel (%p565) target = $region48
      $region47: #{tpu_custom_call.1} parent=43 // pred_region
        _
      $region48: #{tpu_custom_call.1} parent=43 // pred_fallthru
        _
    $region44: #{tpu_custom_call.1} parent=5 // pred_fallthru
      _
    %p568 = scmp.le.s32.totalorder 2, %s12
    // Predicated region
    $region49: #{tpu_custom_call.1} parent=5 // pred_check
      %p569 = pneg %p568
    $region50: #{tpu_custom_call.1} parent=5 // pred_check_branch
      %571 = sbr.rel (%p569) target = $region52
    $region51: #{tpu_custom_call.1} parent=5 // pred_region
      %s572 = ssub.s32 %s12, 2
      // Predicated region
      $region53: #{tpu_custom_call.1} parent=51 // pred_check
        %p573 = pneg %p172
      $region54: #{tpu_custom_call.1} parent=51 // pred_check_branch
        %575 = sbr.rel (%p573) target = $region56
      $region55: #{tpu_custom_call.1} parent=51 // pred_region
        %p576 = scmp.lt.s32.totalorder %s18, 1
        %s577 = scalar_select %p576, %s18, 1
        %s578 = smul.addr %s577, 8
        %s579 = scalar_lea.vmem %s6, %s578
      $region56: #{tpu_custom_call.1} parent=51 // pred_fallthru
        _
    $region52: #{tpu_custom_call.1} parent=5 // pred_fallthru
      _
  $region6: #{tpu_custom_call.1} parent=0 // loop_footer
    %s16 = sadd.s32 1, %s12
  $region7: #{tpu_custom_call.1} parent=0 // loop_footer_branch
    %11 = sbr.rel target = $region3
  $region8: #{tpu_custom_call.1} parent=0 // loop_exit
    _

</llo_original>
